<compile_context>
chip_gen: v7x
topology: tpu7x:2x2x1
jax: 0.10.0
libtpu: 0.0.40
codegen_flags: <defaults>
</compile_context>

<pallas_src>
import jax
import jax.numpy as jnp
from jax.experimental import pallas as pl
from jax.experimental.pallas import tpu as pltpu


LANE = 128     # lane width: every feature dim is padded to a multiple of this
SUBLANE = 8    # sublane granularity for the batch tile


def _round_up(n, m):
    return ((n + m - 1) // m) * m


# --------------------------------------------------------------------------- #
# Kernel: one batch tile of the full fused forward pass.
# --------------------------------------------------------------------------- #
def autoencoder_kernel(x_ref,
                       w1_ref, b1_ref,
                       w2_ref, b2_ref,
                       w3_ref, b3_ref,
                       w4_ref, b4_ref,
                       out_ref):
    # bf16 operands on the MXU, f32 accumulation, f32 bias-add / ReLU epilogue.
    x = x_ref[...].astype(jnp.bfloat16)

    # Hoist bias loads once per tile.
    b1 = b1_ref[...]
    b2 = b2_ref[...]
    b3 = b3_ref[...]
    b4 = b4_ref[...]

    # --- Encoder ---
    h1 = jnp.dot(x, w1_ref[...], preferred_element_type=jnp.float32) + b1
    h1 = jnp.maximum(h1, 0.0).astype(jnp.bfloat16)          # ReLU in f32, cast for MXU

    z = jnp.dot(h1, w2_ref[...], preferred_element_type=jnp.float32) + b2
    z = z.astype(jnp.bfloat16)

    # --- Decoder ---
    h2 = jnp.dot(z, w3_ref[...], preferred_element_type=jnp.float32) + b3
    h2 = jnp.maximum(h2, 0.0).astype(jnp.bfloat16)

    y = jnp.dot(h2, w4_ref[...], preferred_element_type=jnp.float32) + b4
    out_ref[...] = y.astype(out_ref.dtype)


# --------------------------------------------------------------------------- #
# Wrapper: pads to lane-dense shapes, builds the batch grid, slices back.
# --------------------------------------------------------------------------- #
def autoencoder_forward(x, kparams, *, tile_m=256):
    """x: (batch, input_dim) f32.  kparams: padded bf16 weights / f32 biases
    produced by `pad_and_cast_params`.  Returns (batch, input_dim) f32."""
    batch, input_dim = x.shape
    di = kparams["w1"].shape[0]          # padded input dim  (multiple of 128)
    dh = kparams["w1"].shape[1]          # padded hidden dim (multiple of 128)
    dl = kparams["w2"].shape[1]          # padded latent dim (multiple of 128)
    assert input_dim <= di

    # Batch tile: multiple of 8, no larger than needed for small batches.
    tile_m = min(tile_m, _round_up(batch, SUBLANE))
    tile_m = _round_up(tile_m, SUBLANE)
    padded_batch = _round_up(batch, tile_m)

    x_p = jnp.pad(x.astype(jnp.float32),
                  ((0, padded_batch - batch), (0, di - input_dim)))

    grid = (padded_batch // tile_m,)

    # x / out: tiled over the batch. Weights/biases: constant block (resident).
    row_spec = pl.BlockSpec((tile_m, di), lambda i: (i, 0))

    def const(shape):
        return pl.BlockSpec(shape, lambda i: (0, 0))

    in_specs = [
        row_spec,                                   # x tile
        const((di, dh)), const((1, dh)),            # W1, b1
        const((dh, dl)), const((1, dl)),            # W2, b2
        const((dl, dh)), const((1, dh)),            # W3, b3
        const((dh, di)), const((1, di)),            # W4, b4
    ]

    # Advisory cost estimate for XLA's scheduler.
    mac = di * dh + dh * dl + dl * dh + dh * di
    flops = 2 * padded_batch * mac
    weight_bytes = 2 * mac + 4 * (dh + dl + dh + di)
    bytes_accessed = padded_batch * di * 4 * 2 + weight_bytes

    out = pl.pallas_call(
        autoencoder_kernel,
        out_shape=jax.ShapeDtypeStruct((padded_batch, di), jnp.float32),
        grid_spec=pltpu.PrefetchScalarGridSpec(
            num_scalar_prefetch=0,
            grid=grid,
            in_specs=in_specs,
            out_specs=row_spec,
        ),
        compiler_params=pltpu.CompilerParams(
            dimension_semantics=("parallel",),
            vmem_limit_bytes=32 * 1024 * 1024,
        ),
        cost_estimate=pl.CostEstimate(
            flops=flops, transcendentals=0, bytes_accessed=bytes_accessed),
    )(x_p,
      kparams["w1"], kparams["b1"],
      kparams["w2"], kparams["b2"],
      kparams["w3"], kparams["b3"],
      kparams["w4"], kparams["b4"])

    return out[:batch, :input_dim]


# --------------------------------------------------------------------------- #
# Parameters (deterministic, synthetic — equivalent layout to nn.Linear).
# Logical weights are (in_features, out_features) so y = x @ W + b.
# --------------------------------------------------------------------------- #
def init_params(key, input_dim, hidden_dim, latent_dim):
    ks = jax.random.split(key, 8)

    def linear(kw, kb, fan_in, fan_out):
        bound = 1.0 / jnp.sqrt(fan_in)
        w = jax.random.uniform(kw, (fan_in, fan_out), jnp.float32, -bound, bound)
        b = jax.random.uniform(kb, (1, fan_out), jnp.float32, -bound, bound)
        return w, b

    w1, b1 = linear(ks[0], ks[1], input_dim, hidden_dim)    # encoder.fc1
    w2, b2 = linear(ks[2], ks[3], hidden_dim, latent_dim)   # encoder.fc2
    w3, b3 = linear(ks[4], ks[5], latent_dim, hidden_dim)   # decoder.fc1
    w4, b4 = linear(ks[6], ks[7], hidden_dim, input_dim)    # decoder.fc2
    return {"w1": w1, "b1": b1, "w2": w2, "b2": b2,
            "w3": w3, "b3": b3, "w4": w4, "b4": b4}


def pad_and_cast_params(p, input_dim, hidden_dim, latent_dim):
    """Zero-pad all feature dims to multiples of 128 (lane-dense) and cast
    weights to bf16 (f32 biases).  Zero padding preserves the math exactly."""
    di = _round_up(input_dim, LANE)
    dh = _round_up(hidden_dim, LANE)
    dl = _round_up(latent_dim, LANE)

    def pad_w(w, rows, cols):
        return jnp.pad(w, ((0, rows - w.shape[0]),
                           (0, cols - w.shape[1]))).astype(jnp.bfloat16)

    def pad_b(b, cols):
        return jnp.pad(b, ((0, 0), (0, cols - b.shape[1]))).astype(jnp.float32)

    return {
        "w1": pad_w(p["w1"], di, dh), "b1": pad_b(p["b1"], dh),
        "w2": pad_w(p["w2"], dh, dl), "b2": pad_b(p["b2"], dl),
        "w3": pad_w(p["w3"], dl, dh), "b3": pad_b(p["b3"], dh),
        "w4": pad_w(p["w4"], dh, di), "b4": pad_b(p["b4"], di),
    }


# --------------------------------------------------------------------------- #
# References.
# --------------------------------------------------------------------------- #
def reference_forward_f32(x, p):
    h1 = jnp.maximum(x @ p["w1"] + p["b1"], 0.0)
    z = h1 @ p["w2"] + p["b2"]
    h2 = jnp.maximum(z @ p["w3"] + p["b3"], 0.0)
    return h2 @ p["w4"] + p["b4"]


def reference_forward_bf16(x, p):
    """Mirrors the kernel arithmetic (bf16 operands, f32 accumulation)."""
    bf = jnp.bfloat16

    def lin(a, w, b):
        return jnp.dot(a.astype(bf), w.astype(bf),
                       preferred_element_type=jnp.float32) + b

    h1 = jnp.maximum(lin(x, p["w1"], p["b1"]), 0.0)
    z = lin(h1, p["w2"], p["b2"])
    h2 = jnp.maximum(lin(z, p["w3"], p["b3"]), 0.0)
    return lin(h2, p["w4"], p["b4"])


if __name__ == "__main__":
    batch, input_dim, hidden_dim, latent_dim = 8, 64, 32, 16

    key = jax.random.PRNGKey(0)
    kx, kp = jax.random.split(key)
    x = jax.random.normal(kx, (batch, input_dim), dtype=jnp.float32)

    params = init_params(kp, input_dim, hidden_dim, latent_dim)
    kparams = pad_and_cast_params(params, input_dim, hidden_dim, latent_dim)

    # Small-batch run (single grid step).
    out = jax.block_until_ready(autoencoder_forward(x, kparams))
    assert out.shape == (batch, input_dim)
    assert jnp.allclose(out, reference_forward_bf16(x, params),
                        atol=1e-2, rtol=1e-2), "mismatch vs. bf16 reference"
    assert jnp.allclose(out, reference_forward_f32(x, params),
                        atol=1e-1, rtol=1e-1), "mismatch vs. f32 reference"

    # Multi-tile run (exercises the batch grid + row padding path).
    x2 = jax.random.normal(jax.random.PRNGKey(1), (40, input_dim), jnp.float32)
    out2 = jax.block_until_ready(autoencoder_forward(x2, kparams, tile_m=16))
    assert out2.shape == (40, input_dim)
    assert jnp.allclose(out2, reference_forward_bf16(x2, params),
                        atol=1e-2, rtol=1e-2), "multi-tile mismatch"

    print("KERNEL_OK")
</pallas_src>

<mosaic_0001>
module attributes {stable_mosaic.version = 11 : i64} {
  func.func @autoencoder_kernel(%arg0: i32, %arg1: memref<8x128xf32, #tpu.memory_space<vmem>>, %arg2: memref<128x128xbf16, #tpu.memory_space<vmem>>, %arg3: memref<1x128xf32, #tpu.memory_space<vmem>>, %arg4: memref<128x128xbf16, #tpu.memory_space<vmem>>, %arg5: memref<1x128xf32, #tpu.memory_space<vmem>>, %arg6: memref<128x128xbf16, #tpu.memory_space<vmem>>, %arg7: memref<1x128xf32, #tpu.memory_space<vmem>>, %arg8: memref<128x128xbf16, #tpu.memory_space<vmem>>, %arg9: memref<1x128xf32, #tpu.memory_space<vmem>>, %arg10: memref<8x128xf32, #tpu.memory_space<vmem>>) attributes {dimension_semantics = [#tpu.dimension_semantics<parallel>], iteration_bounds = array<i64: 1>, scalar_prefetch = 0 : i64, scratch_operands = 0 : i64, tpu.core_type = #tpu.core_type<tc>, window_params = [{transform_indices = @transform_0, window_bounds = array<i64: 8, 128>}, {pipeline_mode = #tpu.pipeline_mode<synchronous>, transform_indices = @transform_1, window_bounds = array<i64: 128, 128>}, {pipeline_mode = #tpu.pipeline_mode<synchronous>, transform_indices = @transform_2, window_bounds = array<i64: 1, 128>}, {pipeline_mode = #tpu.pipeline_mode<synchronous>, transform_indices = @transform_3, window_bounds = array<i64: 128, 128>}, {pipeline_mode = #tpu.pipeline_mode<synchronous>, transform_indices = @transform_4, window_bounds = array<i64: 1, 128>}, {pipeline_mode = #tpu.pipeline_mode<synchronous>, transform_indices = @transform_5, window_bounds = array<i64: 128, 128>}, {pipeline_mode = #tpu.pipeline_mode<synchronous>, transform_indices = @transform_6, window_bounds = array<i64: 1, 128>}, {pipeline_mode = #tpu.pipeline_mode<synchronous>, transform_indices = @transform_7, window_bounds = array<i64: 128, 128>}, {pipeline_mode = #tpu.pipeline_mode<synchronous>, transform_indices = @transform_8, window_bounds = array<i64: 1, 128>}, {transform_indices = @transform_9, window_bounds = array<i64: 8, 128>}]} {
    %c0 = arith.constant 0 : index
    %c0_0 = arith.constant 0 : index
    %0 = vector.load %arg1[%c0, %c0_0] : memref<8x128xf32, #tpu.memory_space<vmem>>, vector<8x128xf32>
    %1 = arith.truncf %0 : vector<8x128xf32> to vector<8x128xbf16>
    %c0_1 = arith.constant 0 : index
    %c0_2 = arith.constant 0 : index
    %2 = vector.load %arg3[%c0_1, %c0_2] : memref<1x128xf32, #tpu.memory_space<vmem>>, vector<1x128xf32>
    %c0_3 = arith.constant 0 : index
    %c0_4 = arith.constant 0 : index
    %3 = vector.load %arg5[%c0_3, %c0_4] : memref<1x128xf32, #tpu.memory_space<vmem>>, vector<1x128xf32>
    %c0_5 = arith.constant 0 : index
    %c0_6 = arith.constant 0 : index
    %4 = vector.load %arg7[%c0_5, %c0_6] : memref<1x128xf32, #tpu.memory_space<vmem>>, vector<1x128xf32>
    %c0_7 = arith.constant 0 : index
    %c0_8 = arith.constant 0 : index
    %5 = vector.load %arg9[%c0_7, %c0_8] : memref<1x128xf32, #tpu.memory_space<vmem>>, vector<1x128xf32>
    %c0_9 = arith.constant 0 : index
    %c0_10 = arith.constant 0 : index
    %6 = vector.load %arg2[%c0_9, %c0_10] : memref<128x128xbf16, #tpu.memory_space<vmem>>, vector<128x128xbf16>
    %cst = arith.constant dense<0.000000e+00> : vector<8x128xf32>
    %7 = tpu.matmul %1, %6, %cst {dimension_numbers = #tpu.dot_dimension_numbers<[1], [0], [0], [1], [0, 0, 1, 1], [], []>} : vector<8x128xbf16>, vector<128x128xbf16>, vector<8x128xf32> -> vector<8x128xf32>
    %8 = vector.broadcast %2 : vector<1x128xf32> to vector<8x128xf32>
    %9 = arith.addf %7, %8 : vector<8x128xf32>
    %cst_11 = arith.constant 0.000000e+00 : f32
    %10 = vector.broadcast %cst_11 : f32 to vector<8x128xf32>
    %11 = arith.maximumf %9, %10 : vector<8x128xf32>
    %12 = arith.truncf %11 : vector<8x128xf32> to vector<8x128xbf16>
    %c0_12 = arith.constant 0 : index
    %c0_13 = arith.constant 0 : index
    %13 = vector.load %arg4[%c0_12, %c0_13] : memref<128x128xbf16, #tpu.memory_space<vmem>>, vector<128x128xbf16>
    %cst_14 = arith.constant dense<0.000000e+00> : vector<8x128xf32>
    %14 = tpu.matmul %12, %13, %cst_14 {dimension_numbers = #tpu.dot_dimension_numbers<[1], [0], [0], [1], [0, 0, 1, 1], [], []>} : vector<8x128xbf16>, vector<128x128xbf16>, vector<8x128xf32> -> vector<8x128xf32>
    %15 = vector.broadcast %3 : vector<1x128xf32> to vector<8x128xf32>
    %16 = arith.addf %14, %15 : vector<8x128xf32>
    %17 = arith.truncf %16 : vector<8x128xf32> to vector<8x128xbf16>
    %c0_15 = arith.constant 0 : index
    %c0_16 = arith.constant 0 : index
    %18 = vector.load %arg6[%c0_15, %c0_16] : memref<128x128xbf16, #tpu.memory_space<vmem>>, vector<128x128xbf16>
    %cst_17 = arith.constant dense<0.000000e+00> : vector<8x128xf32>
    %19 = tpu.matmul %17, %18, %cst_17 {dimension_numbers = #tpu.dot_dimension_numbers<[1], [0], [0], [1], [0, 0, 1, 1], [], []>} : vector<8x128xbf16>, vector<128x128xbf16>, vector<8x128xf32> -> vector<8x128xf32>
    %20 = vector.broadcast %4 : vector<1x128xf32> to vector<8x128xf32>
    %21 = arith.addf %19, %20 : vector<8x128xf32>
    %cst_18 = arith.constant 0.000000e+00 : f32
    %22 = vector.broadcast %cst_18 : f32 to vector<8x128xf32>
    %23 = arith.maximumf %21, %22 : vector<8x128xf32>
    %24 = arith.truncf %23 : vector<8x128xf32> to vector<8x128xbf16>
    %c0_19 = arith.constant 0 : index
    %c0_20 = arith.constant 0 : index
    %25 = vector.load %arg8[%c0_19, %c0_20] : memref<128x128xbf16, #tpu.memory_space<vmem>>, vector<128x128xbf16>
    %cst_21 = arith.constant dense<0.000000e+00> : vector<8x128xf32>
    %26 = tpu.matmul %24, %25, %cst_21 {dimension_numbers = #tpu.dot_dimension_numbers<[1], [0], [0], [1], [0, 0, 1, 1], [], []>} : vector<8x128xbf16>, vector<128x128xbf16>, vector<8x128xf32> -> vector<8x128xf32>
    %27 = vector.broadcast %5 : vector<1x128xf32> to vector<8x128xf32>
    %28 = arith.addf %26, %27 : vector<8x128xf32>
    %c0_22 = arith.constant 0 : index
    %c0_23 = arith.constant 0 : index
    %29 = vector.load %arg10[%c0_22, %c0_23] : memref<8x128xf32, #tpu.memory_space<vmem>>, vector<8x128xf32>
    tpu.vector_store %arg10[%c0_22, %c0_23], %28 {strides = array<i32>} : memref<8x128xf32, #tpu.memory_space<vmem>>, vector<8x128xf32>,
    return
  }
  func.func @transform_0(%arg0: i32) -> (i32, i32) {
    %c0_i32 = arith.constant 0 : i32
    %c0_i32_0 = arith.constant 0 : i32
    return %arg0, %c0_i32 : i32, i32
  }
  func.func @transform_1(%arg0: i32) -> (i32, i32) {
    %c0_i32 = arith.constant 0 : i32
    %c0_i32_0 = arith.constant 0 : i32
    %c0_i32_1 = arith.constant 0 : i32
    return %c0_i32, %c0_i32_0 : i32, i32
  }
  func.func @transform_2(%arg0: i32) -> (i32, i32) {
    %c0_i32 = arith.constant 0 : i32
    %c0_i32_0 = arith.constant 0 : i32
    %c0_i32_1 = arith.constant 0 : i32
    return %c0_i32, %c0_i32_0 : i32, i32
  }
  func.func @transform_3(%arg0: i32) -> (i32, i32) {
    %c0_i32 = arith.constant 0 : i32
    %c0_i32_0 = arith.constant 0 : i32
    %c0_i32_1 = arith.constant 0 : i32
    return %c0_i32, %c0_i32_0 : i32, i32
  }
  func.func @transform_4(%arg0: i32) -> (i32, i32) {
    %c0_i32 = arith.constant 0 : i32
    %c0_i32_0 = arith.constant 0 : i32
    %c0_i32_1 = arith.constant 0 : i32
    return %c0_i32, %c0_i32_0 : i32, i32
  }
  func.func @transform_5(%arg0: i32) -> (i32, i32) {
    %c0_i32 = arith.constant 0 : i32
    %c0_i32_0 = arith.constant 0 : i32
    %c0_i32_1 = arith.constant 0 : i32
    return %c0_i32, %c0_i32_0 : i32, i32
  }
  func.func @transform_6(%arg0: i32) -> (i32, i32) {
    %c0_i32 = arith.constant 0 : i32
    %c0_i32_0 = arith.constant 0 : i32
    %c0_i32_1 = arith.constant 0 : i32
    return %c0_i32, %c0_i32_0 : i32, i32
  }
  func.func @transform_7(%arg0: i32) -> (i32, i32) {
    %c0_i32 = arith.constant 0 : i32
    %c0_i32_0 = arith.constant 0 : i32
    %c0_i32_1 = arith.constant 0 : i32
    return %c0_i32, %c0_i32_0 : i32, i32
  }
  func.func @transform_8(%arg0: i32) -> (i32, i32) {
    %c0_i32 = arith.constant 0 : i32
    %c0_i32_0 = arith.constant 0 : i32
    %c0_i32_1 = arith.constant 0 : i32
    return %c0_i32, %c0_i32_0 : i32, i32
  }
  func.func @transform_9(%arg0: i32) -> (i32, i32) {
    %c0_i32 = arith.constant 0 : i32
    %c0_i32_0 = arith.constant 0 : i32
    return %arg0, %c0_i32 : i32, i32
  }
}

</mosaic_0001>

<llo_original>
// kernel: tpu_custom_call.1
$region0: #{tpu_custom_call.1}
  #allocation0 [shape = 'u32[]', space=smem, size = 0x4, offset = 0x4, fixed_abs, tag = 'smem constant byte address 0x4 - core index']
  #allocation1 [shape = 'u32[144,128]{1,0:T(1,128)}', space=vmem, size = 0x12000, scoped, tag = 'internal scratch']
  %s0 = inlined_call_operand.hbm [shape: f32[8,128], index: 0, kind: input, shape index: {}]
  %s1 = inlined_call_operand.hbm [shape: bf16[128,128], index: 1, kind: input, shape index: {}]
  %s2 = inlined_call_operand.vmem [shape: f32[1,128], index: 2, kind: input, shape index: {}]
  %s3 = inlined_call_operand.hbm [shape: bf16[128,128], index: 3, kind: input, shape index: {}]
  %s4 = inlined_call_operand.vmem [shape: f32[1,128], index: 4, kind: input, shape index: {}]
  %s5 = inlined_call_operand.hbm [shape: bf16[128,128], index: 5, kind: input, shape index: {}]
  %s6 = inlined_call_operand.vmem [shape: f32[1,128], index: 6, kind: input, shape index: {}]
  %s7 = inlined_call_operand.hbm [shape: bf16[128,128], index: 7, kind: input, shape index: {}]
  %s8 = inlined_call_operand.vmem [shape: f32[1,128], index: 8, kind: input, shape index: {}]
  %s9 = inlined_call_operand.hbm [shape: f32[8,128], index: 9, kind: output, shape index: {}]
  %s10 = sld [smem:[#allocation0]]
  $region66: #{tpu_custom_call.1} parent=0
    _
  %s12 = ssub.s32 1, %s10
  %s13 = scalar_select 0, %s12, %s10
  $region1: #{tpu_custom_call.1} parent=0
    #allocation2 [shape = 'u8[4096]{0}', space=vmem, size = 0x1000, scoped, tag = 'input window, operand 0, single buffered']
    #allocation3 [shape = 's32[1]{0}', space=sflag, size = 0x4, scoped, tag = 'scoped memory for tpu_custom_call.1']
    #allocation4 [shape = 's32[1]{0}', space=sflag, size = 0x4, scoped, tag = 'scoped memory for tpu_custom_call.1']
    #allocation5 [shape = 'u8[32768]{0}', space=vmem, size = 0x8000, scoped, tag = 'input window, operand 1, single buffered']
    #allocation6 [shape = 's32[1]{0}', space=sflag, size = 0x4, scoped, tag = 'scoped memory for tpu_custom_call.1']
    #allocation7 [shape = 'u8[32768]{0}', space=vmem, size = 0x8000, scoped, tag = 'input window, operand 3, single buffered']
    #allocation8 [shape = 'u8[32768]{0}', space=vmem, size = 0x8000, scoped, tag = 'input window, operand 5, single buffered']
    #allocation9 [shape = 's32[1]{0}', space=sflag, size = 0x4, scoped, tag = 'scoped memory for tpu_custom_call.1']
    #allocation10 [shape = 'u8[32768]{0}', space=vmem, size = 0x8000, scoped, tag = 'input window, operand 7, single buffered']
    #allocation11 [shape = 'u8[4096]{0}', space=vmem, size = 0x1000, scoped, tag = 'output window, operand 0, single buffered']
    %14 = vsyncpa [#allocation3], 0
    %15 = vsyncpa [#allocation6], 0
    %16 = vsyncpa [#allocation9], 0
    %17 = vsyncpa [#allocation4], 0
    // Predicated region
    $region2: #{tpu_custom_call.1} parent=1 // pred_check
      _
    $region3: #{tpu_custom_call.1} parent=1 // pred_check_branch
      %19 = sbr.rel (0) target = $region5
    $region4: #{tpu_custom_call.1} parent=1 // pred_region
      %s21 = ssub.s32 128, 128
      %22 = vsyncadd [#allocation3], %s21
      %s24 = sshll.u32 [#allocation2], 4
      %s25 = int_to_ptr.vmem [resolvable:$true] %s24
      %27 = dma.hbm_to_vmem [thread:$0]  %s0, 128, %s25, [#allocation3]
    $region5: #{tpu_custom_call.1} parent=1 // pred_fallthru
      _
    // Predicated region
    $region6: #{tpu_custom_call.1} parent=1 // pred_check
      _
    $region7: #{tpu_custom_call.1} parent=1 // pred_check_branch
      %29 = sbr.rel (0) target = $region9
    $region8: #{tpu_custom_call.1} parent=1 // pred_region
      %s31 = ssub.s32 1024, 1024
      %32 = vsyncadd [#allocation6], %s31
      %s33 = sshll.u32 [#allocation5], 4
      %s34 = int_to_ptr.vmem [resolvable:$true] %s33
      %39 = dma.hbm_to_vmem [thread:$0]  %s1, 1024, %s34, [#allocation6], 64, 64, 4
    $region9: #{tpu_custom_call.1} parent=1 // pred_fallthru
      _
    // Predicated region
    $region10: #{tpu_custom_call.1} parent=1 // pred_check
      _
    $region11: #{tpu_custom_call.1} parent=1 // pred_check_branch
      %41 = sbr.rel (0) target = $region13
    $region12: #{tpu_custom_call.1} parent=1 // pred_region
      _
    $region13: #{tpu_custom_call.1} parent=1 // pred_fallthru
      _
    // Predicated region
    $region14: #{tpu_custom_call.1} parent=1 // pred_check
      _
    $region15: #{tpu_custom_call.1} parent=1 // pred_check_branch
      %43 = sbr.rel (0) target = $region17
    $region16: #{tpu_custom_call.1} parent=1 // pred_region
      %s45 = ssub.s32 1024, 1024
      %46 = vsyncadd [#allocation6], %s45
      %s47 = sshll.u32 [#allocation7], 4
      %s48 = int_to_ptr.vmem [resolvable:$true] %s47
      %53 = dma.hbm_to_vmem [thread:$0]  %s3, 1024, %s48, [#allocation6], 64, 64, 4
    $region17: #{tpu_custom_call.1} parent=1 // pred_fallthru
      _
    // Predicated region
    $region18: #{tpu_custom_call.1} parent=1 // pred_check
      _
    $region19: #{tpu_custom_call.1} parent=1 // pred_check_branch
      %55 = sbr.rel (0) target = $region21
    $region20: #{tpu_custom_call.1} parent=1 // pred_region
      _
    $region21: #{tpu_custom_call.1} parent=1 // pred_fallthru
      _
    // Predicated region
    $region22: #{tpu_custom_call.1} parent=1 // pred_check
      _
    $region23: #{tpu_custom_call.1} parent=1 // pred_check_branch
      %57 = sbr.rel (0) target = $region25
    $region24: #{tpu_custom_call.1} parent=1 // pred_region
      %s59 = ssub.s32 1024, 1024
      %60 = vsyncadd [#allocation9], %s59
      %s61 = sshll.u32 [#allocation8], 4
      %s62 = int_to_ptr.vmem [resolvable:$true] %s61
      %67 = dma.hbm_to_vmem [thread:$0]  %s5, 1024, %s62, [#allocation9], 64, 64, 4
    $region25: #{tpu_custom_call.1} parent=1 // pred_fallthru
      _
    // Predicated region
    $region26: #{tpu_custom_call.1} parent=1 // pred_check
      _
    $region27: #{tpu_custom_call.1} parent=1 // pred_check_branch
      %69 = sbr.rel (0) target = $region29
    $region28: #{tpu_custom_call.1} parent=1 // pred_region
      _
    $region29: #{tpu_custom_call.1} parent=1 // pred_fallthru
      _
    // Predicated region
    $region30: #{tpu_custom_call.1} parent=1 // pred_check
      _
    $region31: #{tpu_custom_call.1} parent=1 // pred_check_branch
      %71 = sbr.rel (0) target = $region33
    $region32: #{tpu_custom_call.1} parent=1 // pred_region
      %s73 = ssub.s32 1024, 1024
      %74 = vsyncadd [#allocation9], %s73
      %s75 = sshll.u32 [#allocation10], 4
      %s76 = int_to_ptr.vmem [resolvable:$true] %s75
      %81 = dma.hbm_to_vmem [thread:$0]  %s7, 1024, %s76, [#allocation9], 64, 64, 4
    $region33: #{tpu_custom_call.1} parent=1 // pred_fallthru
      _
    // Predicated region
    $region34: #{tpu_custom_call.1} parent=1 // pred_check
      _
    $region35: #{tpu_custom_call.1} parent=1 // pred_check_branch
      %83 = sbr.rel (0) target = $region37
    $region36: #{tpu_custom_call.1} parent=1 // pred_region
      _
    $region37: #{tpu_custom_call.1} parent=1 // pred_fallthru
      _
    // Predicated region
    $region38: #{tpu_custom_call.1} parent=1 // pred_check
      _
    $region39: #{tpu_custom_call.1} parent=1 // pred_check_branch
      %85 = sbr.rel (0) target = $region41
    $region40: #{tpu_custom_call.1} parent=1 // pred_region
      %86 = dma.done [#allocation3], 128
    $region41: #{tpu_custom_call.1} parent=1 // pred_fallthru
      _
    // Predicated region
    $region42: #{tpu_custom_call.1} parent=1 // pred_check
      _
    $region43: #{tpu_custom_call.1} parent=1 // pred_check_branch
      %88 = sbr.rel (0) target = $region45
    $region44: #{tpu_custom_call.1} parent=1 // pred_region
      %89 = dma.done [#allocation6], 1024
    $region45: #{tpu_custom_call.1} parent=1 // pred_fallthru
      _
    // Predicated region
    $region46: #{tpu_custom_call.1} parent=1 // pred_check
      _
    $region47: #{tpu_custom_call.1} parent=1 // pred_check_branch
      %91 = sbr.rel (0) target = $region49
    $region48: #{tpu_custom_call.1} parent=1 // pred_region
      %92 = dma.done [#allocation6], 1024
    $region49: #{tpu_custom_call.1} parent=1 // pred_fallthru
      _
    // Predicated region
    $region50: #{tpu_custom_call.1} parent=1 // pred_check
      _
    $region51: #{tpu_custom_call.1} parent=1 // pred_check_branch
      %94 = sbr.rel (0) target = $region53
    $region52: #{tpu_custom_call.1} parent=1 // pred_region
      %95 = dma.done [#allocation9], 1024
    $region53: #{tpu_custom_call.1} parent=1 // pred_fallthru
      _
    // Predicated region
    $region54: #{tpu_custom_call.1} parent=1 // pred_check
      _
    $region55: #{tpu_custom_call.1} parent=1 // pred_check_branch
      %97 = sbr.rel (0) target = $region57
    $region56: #{tpu_custom_call.1} parent=1 // pred_region
      %98 = dma.done [#allocation9], 1024
    $region57: #{tpu_custom_call.1} parent=1 // pred_fallthru
      _
    %v100 = vld [vmem:[#allocation2] sm:$0xff]
    %v101 = vpack.c.bf16 %v100, %v100
    %v102 = vld [vmem:[%s2] sm:$0x1]
    %v103 = vld [vmem:[%s4] sm:$0x1]
    %v104 = vld [vmem:[%s6] sm:$0x1]
    %v105 = vld [vmem:[%s8] sm:$0x1]
    %v106 = vld [vmem:[#allocation5] sm:$0xf]
    %v107 = vld [vmem:[#allocation5 + $0x4] sm:$0xf]
    %v108 = vld [vmem:[#allocation5 + $0x8] sm:$0xf]
    %v109 = vld [vmem:[#allocation5 + $0xc] sm:$0xf]
    %v110 = vld [vmem:[#allocation5 + $0x10] sm:$0xf]
    %v111 = vld [vmem:[#allocation5 + $0x14] sm:$0xf]
    %v112 = vld [vmem:[#allocation5 + $0x18] sm:$0xf]
    %v113 = vld [vmem:[#allocation5 + $0x1c] sm:$0xf]
    %v114 = vld [vmem:[#allocation5 + $0x20] sm:$0xf]
    %v115 = vld [vmem:[#allocation5 + $0x24] sm:$0xf]
    %v116 = vld [vmem:[#allocation5 + $0x28] sm:$0xf]
    %v117 = vld [vmem:[#allocation5 + $0x2c] sm:$0xf]
    %v118 = vld [vmem:[#allocation5 + $0x30] sm:$0xf]
    %v119 = vld [vmem:[#allocation5 + $0x34] sm:$0xf]
    %v120 = vld [vmem:[#allocation5 + $0x38] sm:$0xf]
    %v121 = vld [vmem:[#allocation5 + $0x3c] sm:$0xf]
    %v123 = vlaneseq
    %v124 = vshrl.u32 %v123, 7
    %v125 = vsub.s32 0, %v124
    %v126 = vrot.slane %v102, %v125
    %v144 = vunpack.c.l.b16 %v106
    %v145 = vunpack.c.l.b16 %v107
    %v146 = vunpack.c.l.b16 %v108
    %v147 = vunpack.c.l.b16 %v109
    %v148 = vunpack.c.l.b16 %v110
    %v149 = vunpack.c.l.b16 %v111
    %v150 = vunpack.c.l.b16 %v112
    %v151 = vunpack.c.l.b16 %v113
    %v152 = vunpack.c.l.b16 %v114
    %v153 = vunpack.c.l.b16 %v115
    %v154 = vunpack.c.l.b16 %v116
    %v155 = vunpack.c.l.b16 %v117
    %v156 = vunpack.c.l.b16 %v118
    %v157 = vunpack.c.l.b16 %v119
    %v158 = vunpack.c.l.b16 %v120
    %v159 = vunpack.c.l.b16 %v121
    %v160 = vpack.c.b16 %v145, %v144
    %v161 = vpack.c.b16 %v147, %v146
    %v162 = vpack.c.b16 %v149, %v148
    %v163 = vpack.c.b16 %v151, %v150
    %v164 = vpack.c.b16 %v153, %v152
    %v165 = vpack.c.b16 %v155, %v154
    %v166 = vpack.c.b16 %v157, %v156
    %v167 = vpack.c.b16 %v159, %v158
    %176 = vmatprep.subr.bf16.mxu0 0
    %177 = vmatpush1.bf16.msra.mxu0 %v160
    %178 = vmatprep.subr.bf16.mxu0 0
    %179 = vmatpush1.bf16.msra.mxu0 %v161
    %180 = vmatprep.subr.bf16.mxu0 0
    %181 = vmatpush1.bf16.msra.mxu0 %v162
    %182 = vmatprep.subr.bf16.mxu0 0
    %183 = vmatpush1.bf16.msra.mxu0 %v163
    %184 = vmatprep.subr.bf16.mxu0 0
    %185 = vmatpush1.bf16.msra.mxu0 %v164
    %186 = vmatprep.subr.bf16.mxu0 0
    %187 = vmatpush1.bf16.msra.mxu0 %v165
    %188 = vmatprep.subr.bf16.mxu0 0
    %189 = vmatpush1.bf16.msra.mxu0 %v166
    %190 = vmatprep.subr.bf16.mxu0 0
    %191 = vmatpush1.bf16.msra.mxu0 %v167
    %192 = vmatprep.subr.bf16.mxu0 0
    %193 = vmatpush1.bf16.msra.mxu0 0
    %194 = vmatprep.subr.bf16.mxu0 0
    %195 = vmatpush1.bf16.msra.mxu0 0
    %196 = vmatprep.subr.bf16.mxu0 0
    %197 = vmatpush1.bf16.msra.mxu0 0
    %198 = vmatprep.subr.bf16.mxu0 0
    %199 = vmatpush1.bf16.msra.mxu0 0
    %200 = vmatprep.subr.bf16.mxu0 0
    %201 = vmatpush1.bf16.msra.mxu0 0
    %202 = vmatprep.subr.bf16.mxu0 0
    %203 = vmatpush1.bf16.msra.mxu0 0
    %204 = vmatprep.subr.bf16.mxu0 0
    %205 = vmatpush1.bf16.msra.mxu0 0
    %206 = vmatprep.subr.bf16.mxu0 0
    %207 = vmatpush1.bf16.msra.mxu0 0
    %208 = vmatprep.mubr.bf16.mxu0 0
    %209 = vmatmul.mubr.bf16.gmra.mrb[0].mxu0 %v101
    %v210 = vpop.f32.mrb[0].mxu0
    %v211 = vadd.f32 %v126, %v210
    %v212 = vpop.f32.mrb[0].mxu0
    %v213 = vpop.f32.mrb[0].mxu0
    %v214 = vpop.f32.mrb[0].mxu0
    %215 = vdwg.mxu0
    %v216 = vmax.f32 %v211, 0.0
    %v217 = vpack.c.bf16 %v216, %v216
    %v218 = vld [vmem:[#allocation7] sm:$0xf]
    %v219 = vld [vmem:[#allocation7 + $0x4] sm:$0xf]
    %v220 = vld [vmem:[#allocation7 + $0x8] sm:$0xf]
    %v221 = vld [vmem:[#allocation7 + $0xc] sm:$0xf]
    %v222 = vld [vmem:[#allocation7 + $0x10] sm:$0xf]
    %v223 = vld [vmem:[#allocation7 + $0x14] sm:$0xf]
    %v224 = vld [vmem:[#allocation7 + $0x18] sm:$0xf]
    %v225 = vld [vmem:[#allocation7 + $0x1c] sm:$0xf]
    %v226 = vld [vmem:[#allocation7 + $0x20] sm:$0xf]
    %v227 = vld [vmem:[#allocation7 + $0x24] sm:$0xf]
    %v228 = vld [vmem:[#allocation7 + $0x28] sm:$0xf]
    %v229 = vld [vmem:[#allocation7 + $0x2c] sm:$0xf]
    %v230 = vld [vmem:[#allocation7 + $0x30] sm:$0xf]
    %v231 = vld [vmem:[#allocation7 + $0x34] sm:$0xf]
    %v232 = vld [vmem:[#allocation7 + $0x38] sm:$0xf]
    %v233 = vld [vmem:[#allocation7 + $0x3c] sm:$0xf]
    %v235 = vlaneseq
    %v236 = vshrl.u32 %v235, 7
    %v237 = vsub.s32 0, %v236
    %v238 = vrot.slane %v103, %v237
    %v256 = vunpack.c.l.b16 %v218
    %v257 = vunpack.c.l.b16 %v219
    %v258 = vunpack.c.l.b16 %v220
    %v259 = vunpack.c.l.b16 %v221
    %v260 = vunpack.c.l.b16 %v222
    %v261 = vunpack.c.l.b16 %v223
    %v262 = vunpack.c.l.b16 %v224
    %v263 = vunpack.c.l.b16 %v225
    %v264 = vunpack.c.l.b16 %v226
    %v265 = vunpack.c.l.b16 %v227
    %v266 = vunpack.c.l.b16 %v228
    %v267 = vunpack.c.l.b16 %v229
    %v268 = vunpack.c.l.b16 %v230
    %v269 = vunpack.c.l.b16 %v231
    %v270 = vunpack.c.l.b16 %v232
    %v271 = vunpack.c.l.b16 %v233
    %v272 = vpack.c.b16 %v257, %v256
    %v273 = vpack.c.b16 %v259, %v258
    %v274 = vpack.c.b16 %v261, %v260
    %v275 = vpack.c.b16 %v263, %v262
    %v276 = vpack.c.b16 %v265, %v264
    %v277 = vpack.c.b16 %v267, %v266
    %v278 = vpack.c.b16 %v269, %v268
    %v279 = vpack.c.b16 %v271, %v270
    %288 = vmatprep.subr.bf16.mxu0 0
    %289 = vmatpush1.bf16.msra.mxu0 %v272
    %290 = vmatprep.subr.bf16.mxu0 0
    %291 = vmatpush1.bf16.msra.mxu0 %v273
    %292 = vmatprep.subr.bf16.mxu0 0
    %293 = vmatpush1.bf16.msra.mxu0 %v274
    %294 = vmatprep.subr.bf16.mxu0 0
    %295 = vmatpush1.bf16.msra.mxu0 %v275
    %296 = vmatprep.subr.bf16.mxu0 0
    %297 = vmatpush1.bf16.msra.mxu0 %v276
    %298 = vmatprep.subr.bf16.mxu0 0
    %299 = vmatpush1.bf16.msra.mxu0 %v277
    %300 = vmatprep.subr.bf16.mxu0 0
    %301 = vmatpush1.bf16.msra.mxu0 %v278
    %302 = vmatprep.subr.bf16.mxu0 0
    %303 = vmatpush1.bf16.msra.mxu0 %v279
    %304 = vmatprep.subr.bf16.mxu0 0
    %305 = vmatpush1.bf16.msra.mxu0 0
    %306 = vmatprep.subr.bf16.mxu0 0
    %307 = vmatpush1.bf16.msra.mxu0 0
    %308 = vmatprep.subr.bf16.mxu0 0
    %309 = vmatpush1.bf16.msra.mxu0 0
    %310 = vmatprep.subr.bf16.mxu0 0
    %311 = vmatpush1.bf16.msra.mxu0 0
    %312 = vmatprep.subr.bf16.mxu0 0
    %313 = vmatpush1.bf16.msra.mxu0 0
    %314 = vmatprep.subr.bf16.mxu0 0
    %315 = vmatpush1.bf16.msra.mxu0 0
    %316 = vmatprep.subr.bf16.mxu0 0
    %317 = vmatpush1.bf16.msra.mxu0 0
    %318 = vmatprep.subr.bf16.mxu0 0
    %319 = vmatpush1.bf16.msra.mxu0 0
    %320 = vmatprep.mubr.bf16.mxu0 0
    %321 = vmatmul.mubr.bf16.gmra.mrb[0].mxu0 %v217
    %v322 = vpop.f32.mrb[0].mxu0
    %v323 = vadd.f32 %v238, %v322
    %v324 = vpop.f32.mrb[0].mxu0
    %v325 = vpop.f32.mrb[0].mxu0
    %v326 = vpop.f32.mrb[0].mxu0
    %327 = vdwg.mxu0
    %v328 = vpack.c.bf16 %v323, %v323
    %v329 = vld [vmem:[#allocation8] sm:$0xf]
    %v330 = vld [vmem:[#allocation8 + $0x4] sm:$0xf]
    %v331 = vld [vmem:[#allocation8 + $0x8] sm:$0xf]
    %v332 = vld [vmem:[#allocation8 + $0xc] sm:$0xf]
    %v333 = vld [vmem:[#allocation8 + $0x10] sm:$0xf]
    %v334 = vld [vmem:[#allocation8 + $0x14] sm:$0xf]
    %v335 = vld [vmem:[#allocation8 + $0x18] sm:$0xf]
    %v336 = vld [vmem:[#allocation8 + $0x1c] sm:$0xf]
    %v337 = vld [vmem:[#allocation8 + $0x20] sm:$0xf]
    %v338 = vld [vmem:[#allocation8 + $0x24] sm:$0xf]
    %v339 = vld [vmem:[#allocation8 + $0x28] sm:$0xf]
    %v340 = vld [vmem:[#allocation8 + $0x2c] sm:$0xf]
    %v341 = vld [vmem:[#allocation8 + $0x30] sm:$0xf]
    %v342 = vld [vmem:[#allocation8 + $0x34] sm:$0xf]
    %v343 = vld [vmem:[#allocation8 + $0x38] sm:$0xf]
    %v344 = vld [vmem:[#allocation8 + $0x3c] sm:$0xf]
    %v346 = vlaneseq
    %v347 = vshrl.u32 %v346, 7
    %v348 = vsub.s32 0, %v347
    %v349 = vrot.slane %v104, %v348
    %v367 = vunpack.c.l.b16 %v329
    %v368 = vunpack.c.l.b16 %v330
    %v369 = vunpack.c.l.b16 %v331
    %v370 = vunpack.c.l.b16 %v332
    %v371 = vunpack.c.l.b16 %v333
    %v372 = vunpack.c.l.b16 %v334
    %v373 = vunpack.c.l.b16 %v335
    %v374 = vunpack.c.l.b16 %v336
    %v375 = vunpack.c.l.b16 %v337
    %v376 = vunpack.c.l.b16 %v338
    %v377 = vunpack.c.l.b16 %v339
    %v378 = vunpack.c.l.b16 %v340
    %v379 = vunpack.c.l.b16 %v341
    %v380 = vunpack.c.l.b16 %v342
    %v381 = vunpack.c.l.b16 %v343
    %v382 = vunpack.c.l.b16 %v344
    %v383 = vpack.c.b16 %v368, %v367
    %v384 = vpack.c.b16 %v370, %v369
    %v385 = vpack.c.b16 %v372, %v371
    %v386 = vpack.c.b16 %v374, %v373
    %v387 = vpack.c.b16 %v376, %v375
    %v388 = vpack.c.b16 %v378, %v377
    %v389 = vpack.c.b16 %v380, %v379
    %v390 = vpack.c.b16 %v382, %v381
    %399 = vmatprep.subr.bf16.mxu0 0
    %400 = vmatpush1.bf16.msra.mxu0 %v383
    %401 = vmatprep.subr.bf16.mxu0 0
    %402 = vmatpush1.bf16.msra.mxu0 %v384
    %403 = vmatprep.subr.bf16.mxu0 0
    %404 = vmatpush1.bf16.msra.mxu0 %v385
    %405 = vmatprep.subr.bf16.mxu0 0
    %406 = vmatpush1.bf16.msra.mxu0 %v386
    %407 = vmatprep.subr.bf16.mxu0 0
    %408 = vmatpush1.bf16.msra.mxu0 %v387
    %409 = vmatprep.subr.bf16.mxu0 0
    %410 = vmatpush1.bf16.msra.mxu0 %v388
    %411 = vmatprep.subr.bf16.mxu0 0
    %412 = vmatpush1.bf16.msra.mxu0 %v389
    %413 = vmatprep.subr.bf16.mxu0 0
    %414 = vmatpush1.bf16.msra.mxu0 %v390
    %415 = vmatprep.subr.bf16.mxu0 0
    %416 = vmatpush1.bf16.msra.mxu0 0
    %417 = vmatprep.subr.bf16.mxu0 0
    %418 = vmatpush1.bf16.msra.mxu0 0
    %419 = vmatprep.subr.bf16.mxu0 0
    %420 = vmatpush1.bf16.msra.mxu0 0
    %421 = vmatprep.subr.bf16.mxu0 0
    %422 = vmatpush1.bf16.msra.mxu0 0
    %423 = vmatprep.subr.bf16.mxu0 0
    %424 = vmatpush1.bf16.msra.mxu0 0
    %425 = vmatprep.subr.bf16.mxu0 0
    %426 = vmatpush1.bf16.msra.mxu0 0
    %427 = vmatprep.subr.bf16.mxu0 0
    %428 = vmatpush1.bf16.msra.mxu0 0
    %429 = vmatprep.subr.bf16.mxu0 0
    %430 = vmatpush1.bf16.msra.mxu0 0
    %431 = vmatprep.mubr.bf16.mxu0 0
    %432 = vmatmul.mubr.bf16.gmra.mrb[0].mxu0 %v328
    %v433 = vpop.f32.mrb[0].mxu0
    %v434 = vadd.f32 %v349, %v433
    %v435 = vpop.f32.mrb[0].mxu0
    %v436 = vpop.f32.mrb[0].mxu0
    %v437 = vpop.f32.mrb[0].mxu0
    %438 = vdwg.mxu0
    %v439 = vmax.f32 %v434, 0.0
    %v440 = vpack.c.bf16 %v439, %v439
    %v441 = vld [vmem:[#allocation10] sm:$0xf]
    %v442 = vld [vmem:[#allocation10 + $0x4] sm:$0xf]
    %v443 = vld [vmem:[#allocation10 + $0x8] sm:$0xf]
    %v444 = vld [vmem:[#allocation10 + $0xc] sm:$0xf]
    %v445 = vld [vmem:[#allocation10 + $0x10] sm:$0xf]
    %v446 = vld [vmem:[#allocation10 + $0x14] sm:$0xf]
    %v447 = vld [vmem:[#allocation10 + $0x18] sm:$0xf]
    %v448 = vld [vmem:[#allocation10 + $0x1c] sm:$0xf]
    %v449 = vld [vmem:[#allocation10 + $0x20] sm:$0xf]
    %v450 = vld [vmem:[#allocation10 + $0x24] sm:$0xf]
    %v451 = vld [vmem:[#allocation10 + $0x28] sm:$0xf]
    %v452 = vld [vmem:[#allocation10 + $0x2c] sm:$0xf]
    %v453 = vld [vmem:[#allocation10 + $0x30] sm:$0xf]
    %v454 = vld [vmem:[#allocation10 + $0x34] sm:$0xf]
    %v455 = vld [vmem:[#allocation10 + $0x38] sm:$0xf]
    %v456 = vld [vmem:[#allocation10 + $0x3c] sm:$0xf]
    %v458 = vlaneseq
    %v459 = vshrl.u32 %v458, 7
    %v460 = vsub.s32 0, %v459
    %v461 = vrot.slane %v105, %v460
    %v479 = vunpack.c.l.b16 %v441
    %v480 = vunpack.c.l.b16 %v442
    %v481 = vunpack.c.l.b16 %v443
    %v482 = vunpack.c.l.b16 %v444
    %v483 = vunpack.c.l.b16 %v445
    %v484 = vunpack.c.l.b16 %v446
    %v485 = vunpack.c.l.b16 %v447
    %v486 = vunpack.c.l.b16 %v448
    %v487 = vunpack.c.l.b16 %v449
    %v488 = vunpack.c.l.b16 %v450
    %v489 = vunpack.c.l.b16 %v451
    %v490 = vunpack.c.l.b16 %v452
    %v491 = vunpack.c.l.b16 %v453
    %v492 = vunpack.c.l.b16 %v454
    %v493 = vunpack.c.l.b16 %v455
    %v494 = vunpack.c.l.b16 %v456
    %v495 = vpack.c.b16 %v480, %v479
    %v496 = vpack.c.b16 %v482, %v481
    %v497 = vpack.c.b16 %v484, %v483
    %v498 = vpack.c.b16 %v486, %v485
    %v499 = vpack.c.b16 %v488, %v487
    %v500 = vpack.c.b16 %v490, %v489
    %v501 = vpack.c.b16 %v492, %v491
    %v502 = vpack.c.b16 %v494, %v493
    %511 = vmatprep.subr.bf16.mxu0 0
    %512 = vmatpush1.bf16.msra.mxu0 %v495
    %513 = vmatprep.subr.bf16.mxu0 0
    %514 = vmatpush1.bf16.msra.mxu0 %v496
    %515 = vmatprep.subr.bf16.mxu0 0
    %516 = vmatpush1.bf16.msra.mxu0 %v497
    %517 = vmatprep.subr.bf16.mxu0 0
    %518 = vmatpush1.bf16.msra.mxu0 %v498
    %519 = vmatprep.subr.bf16.mxu0 0
    %520 = vmatpush1.bf16.msra.mxu0 %v499
    %521 = vmatprep.subr.bf16.mxu0 0
    %522 = vmatpush1.bf16.msra.mxu0 %v500
    %523 = vmatprep.subr.bf16.mxu0 0
    %524 = vmatpush1.bf16.msra.mxu0 %v501
    %525 = vmatprep.subr.bf16.mxu0 0
    %526 = vmatpush1.bf16.msra.mxu0 %v502
    %527 = vmatprep.subr.bf16.mxu0 0
    %528 = vmatpush1.bf16.msra.mxu0 0
    %529 = vmatprep.subr.bf16.mxu0 0
    %530 = vmatpush1.bf16.msra.mxu0 0
    %531 = vmatprep.subr.bf16.mxu0 0
    %532 = vmatpush1.bf16.msra.mxu0 0
    %533 = vmatprep.subr.bf16.mxu0 0
    %534 = vmatpush1.bf16.msra.mxu0 0
    %535 = vmatprep.subr.bf16.mxu0 0
    %536 = vmatpush1.bf16.msra.mxu0 0
    %537 = vmatprep.subr.bf16.mxu0 0
    %538 = vmatpush1.bf16.msra.mxu0 0
    %539 = vmatprep.subr.bf16.mxu0 0
    %540 = vmatpush1.bf16.msra.mxu0 0
    %541 = vmatprep.subr.bf16.mxu0 0
    %542 = vmatpush1.bf16.msra.mxu0 0
    %543 = vmatprep.mubr.bf16.mxu0 0
    %544 = vmatmul.mubr.bf16.gmra.mrb[0].mxu0 %v440
    %v545 = vpop.f32.mrb[0].mxu0
    %v546 = vadd.f32 %v461, %v545
    %v547 = vpop.f32.mrb[0].mxu0
    %v548 = vpop.f32.mrb[0].mxu0
    %v549 = vpop.f32.mrb[0].mxu0
    %550 = vdwg.mxu0
    %551 = vst [vmem:[#allocation11] sm:$0xff] %v546
    // Predicated region
    $region58: #{tpu_custom_call.1} parent=1 // pred_check
      _
    $region59: #{tpu_custom_call.1} parent=1 // pred_check_branch
      %553 = sbr.rel (0) target = $region61
    $region60: #{tpu_custom_call.1} parent=1 // pred_region
      %s555 = ssub.s32 128, 128
      %556 = vsyncadd [#allocation4], %s555
      %s558 = sshll.u32 [#allocation11], 4
      %s559 = int_to_ptr.vmem [resolvable:$true] %s558
      %561 = dma.vmem_to_hbm [thread:$0]  %s559, 128, %s9, [#allocation4]
    $region61: #{tpu_custom_call.1} parent=1 // pred_fallthru
      _
    // Predicated region
    $region62: #{tpu_custom_call.1} parent=1 // pred_check
      _
    $region63: #{tpu_custom_call.1} parent=1 // pred_check_branch
      %563 = sbr.rel (0) target = $region65
    $region64: #{tpu_custom_call.1} parent=1 // pred_region
      %564 = dma.done [#allocation4], 128
    $region65: #{tpu_custom_call.1} parent=1 // pred_fallthru
      _
    %565 = vsyncpa [#allocation3], 1
    %566 = vsyncpa [#allocation6], 1
    %567 = vsyncpa [#allocation9], 1
    %568 = vsyncpa [#allocation4], 1

</llo_original>
